<compile_context>
chip_gen: v5e
topology: v5e:2x2
jax: 0.10.0
libtpu: 0.0.40
codegen_flags: <defaults>
</compile_context>

<pallas_src>
import jax
import jax.numpy as jnp
from jax.experimental import pallas as pl
from jax.experimental.pallas import tpu as pltpu

FEATURES = 60          # fixed by the module (fc1: Linear(60, 32))
MAX_TILE_B = 2048      # ~480 KiB x-tile, double-buffered -> ~1 MiB VMEM: fits everywhere
_HIGHEST = jax.lax.Precision.HIGHEST


def fused_mlp_softmax_kernel(x_ref, w_ref, b_ref, out_ref):
    # Single fused affine transform on the MXU: [tile_b, 60] @ [60, c_pad].
    # Precision is pinned (review #2): HIGHEST -> true f32 accumulation, no
    # silent bf16 passes; swap to Precision.DEFAULT if a looser tolerance is OK.
    logits = jnp.dot(x_ref[...], w_ref[...],
                     preferred_element_type=jnp.float32,
                     precision=_HIGHEST)
    logits = logits + b_ref[...]          # (1, c_pad) broadcasts along sublanes
    # Softmax over the (narrow) class axis.  Padded class lanes carry a -1e30
    # bias, so exp(logit - m) underflows to exactly 0 and the denominator only
    # sees the real classes.
    m = jnp.max(logits, axis=1, keepdims=True)
    e = jnp.exp(logits - m)
    denom = jnp.sum(e, axis=1, keepdims=True)
    probs = e * pl.reciprocal(denom, approx=False)   # exact: holds 1e-5 parity
    # Store only the real classes: HBM write is 4*num_classes bytes per row.
    out_ref[...] = probs[:, : out_ref.shape[1]].astype(out_ref.dtype)


def _round_up(x, m):
    return ((x + m - 1) // m) * m


def _choose_batch_tiling(batch):
    """Pick (tile_b, padded_batch) such that tile_b divides padded_batch.

    Goals (review #4/#5/#6): tiles as large as possible (<= MAX_TILE_B), at
    least 2 tiles for big batches so both v7x TensorCores get work, and zero /
    bounded padding so no full-array jnp.pad round-trip in the common cases.
    """
    if batch < 256:
        # One block == the full array: no sublane rounding, no padding at all.
        # (Sub-256 batches are too small to be worth splitting across TCs.)
        return batch, batch
    batch8 = _round_up(batch, 8)                  # sublane alignment (<= 7 rows)
    q = batch8 // 8
    d_hi = min(MAX_TILE_B // 8, q // 2)           # >= 2 tiles, tile <= MAX_TILE_B
    d = next(d for d in range(d_hi, 0, -1) if q % d == 0)
    if 8 * d >= 128:                              # divisor tiling is fat enough
        return 8 * d, batch8
    # Awkward batch (e.g. prime row count): pad up to a few fat tiles instead
    # of many tiny ones (bounded <= tile_b - 1 extra rows).
    tile_b = min(MAX_TILE_B, _round_up(-(-batch8 // 2), 128))
    return tile_b, _round_up(batch8, tile_b)


def net_forward(x, params):
    (w1, b1, w2, b2, w3, b3, w4, b4) = params
    batch, feat = x.shape
    num_classes = w4.shape[1]
    assert 1 <= num_classes

    # --- Fuse the linear chain outside the kernel (exact: no nonlinearities),
    #     in explicit f32 precision (review #2).
    w_eff = jnp.dot(jnp.dot(jnp.dot(w1, w2, precision=_HIGHEST),
                            w3, precision=_HIGHEST),
                    w4, precision=_HIGHEST)                       # [60, C]
    b_eff = (jnp.dot(jnp.dot(jnp.dot(b1, w2, precision=_HIGHEST) + b2,
                             w3, precision=_HIGHEST) + b3,
                     w4, precision=_HIGHEST) + b4)                # [C]

    # --- Pad the class axis only to the next multiple of 8 for the in-kernel
    #     compute; the HBM output stays exactly (batch, num_classes).
    c_pad = max(8, _round_up(num_classes, 8))
    w_pad = jnp.zeros((feat, c_pad), jnp.float32).at[:, :num_classes].set(w_eff)
    b_pad = jnp.full((1, c_pad), jnp.float32(-1e30)).at[0, :num_classes].set(b_eff)

    # --- Batch tiling (reviews #4/#5/#6).
    tile_b, padded_batch = _choose_batch_tiling(batch)
    if padded_batch != batch:
        x = jnp.pad(x, ((0, padded_batch - batch), (0, 0)))

    out = pl.pallas_call(
        fused_mlp_softmax_kernel,
        out_shape=jax.ShapeDtypeStruct((padded_batch, num_classes), jnp.float32),
        grid_spec=pltpu.PrefetchScalarGridSpec(
            num_scalar_prefetch=0,
            grid=(padded_batch // tile_b,),
            in_specs=[
                pl.BlockSpec((tile_b, feat), lambda i: (i, 0)),   # x tiles stream
                pl.BlockSpec((feat, c_pad), lambda i: (0, 0)),    # W_eff resident
                pl.BlockSpec((1, c_pad), lambda i: (0, 0)),       # b_eff resident
            ],
            out_specs=pl.BlockSpec((tile_b, num_classes), lambda i: (i, 0)),
        ),
        compiler_params=pltpu.CompilerParams(
            dimension_semantics=("parallel",),   # batch tiles shard across v7x TCs
        ),
    )(x, w_pad, b_pad)

    # Only the batch slice remains (review #1: the lane slice is gone).
    return out[:batch]


def xavier_uniform(key, fan_in, fan_out):
    # Matches torch.nn.init.xavier_uniform_ (gain=1); stored as [in, out].
    limit = jnp.sqrt(6.0 / (fan_in + fan_out))
    return jax.random.uniform(key, (fan_in, fan_out), jnp.float32, -limit, limit)


def linear_bias(key, fan_in, fan_out):
    # Matches PyTorch default Linear bias init: U(-1/sqrt(fan_in), 1/sqrt(fan_in)).
    bound = 1.0 / jnp.sqrt(jnp.float32(fan_in))
    return jax.random.uniform(key, (fan_out,), jnp.float32, -bound, bound)


def init_params(key, num_classes):
    dims = [60, 32, 16, 8, num_classes]
    params = []
    keys = jax.random.split(key, 8)
    for i in range(4):
        w = xavier_uniform(keys[2 * i], dims[i], dims[i + 1])
        b = linear_bias(keys[2 * i + 1], dims[i], dims[i + 1])
        params.extend([w, b])
    return tuple(params)


def reference_forward(x, params):
    # Layer-by-layer f32 reference (matches the PyTorch forward semantics).
    (w1, b1, w2, b2, w3, b3, w4, b4) = params
    h = jnp.dot(x, w1, precision=_HIGHEST) + b1
    h = jnp.dot(h, w2, precision=_HIGHEST) + b2
    h = jnp.dot(h, w3, precision=_HIGHEST) + b3
    logits = jnp.dot(h, w4, precision=_HIGHEST) + b4
    return jax.nn.softmax(logits, axis=1)


if __name__ == "__main__":
    key = jax.random.PRNGKey(0)
    k_x, k_p = jax.random.split(key)

    batch = 8
    num_classes = 4
    x = jax.random.normal(k_x, (batch, FEATURES), dtype=jnp.float32)
    params = init_params(k_p, num_classes)

    out = net_forward(x, params)
    out = jax.block_until_ready(out)

    ref = reference_forward(x, params)
    assert out.shape == (batch, num_classes)
    assert jnp.allclose(out, ref, atol=1e-5, rtol=1e-5)
    assert jnp.allclose(jnp.sum(out, axis=1), 1.0, atol=1e-5)

    print("KERNEL_OK")
</pallas_src>

<mosaic_0001>
module attributes {stable_mosaic.version = 11 : i64} {
  func.func @fused_mlp_softmax_kernel(%arg0: i32, %arg1: memref<8x60xf32, #tpu.memory_space<vmem>>, %arg2: memref<60x8xf32, #tpu.memory_space<vmem>>, %arg3: memref<1x8xf32, #tpu.memory_space<vmem>>, %arg4: memref<8x4xf32, #tpu.memory_space<vmem>>) attributes {dimension_semantics = [#tpu.dimension_semantics<parallel>], iteration_bounds = array<i64: 1>, scalar_prefetch = 0 : i64, scratch_operands = 0 : i64, tpu.core_type = #tpu.core_type<tc>, window_params = [{transform_indices = @transform_0, window_bounds = array<i64: 8, 60>}, {pipeline_mode = #tpu.pipeline_mode<synchronous>, transform_indices = @transform_1, window_bounds = array<i64: 60, 8>}, {pipeline_mode = #tpu.pipeline_mode<synchronous>, transform_indices = @transform_2, window_bounds = array<i64: 1, 8>}, {transform_indices = @transform_3, window_bounds = array<i64: 8, 4>}]} {
    %c0 = arith.constant 0 : index
    %c0_0 = arith.constant 0 : index
    %0 = vector.load %arg1[%c0, %c0_0] : memref<8x60xf32, #tpu.memory_space<vmem>>, vector<8x60xf32>
    %c0_1 = arith.constant 0 : index
    %c0_2 = arith.constant 0 : index
    %1 = vector.load %arg2[%c0_1, %c0_2] : memref<60x8xf32, #tpu.memory_space<vmem>>, vector<60x8xf32>
    %cst = arith.constant dense<0.000000e+00> : vector<8x8xf32>
    %2 = tpu.matmul %0, %1, %cst {dimension_numbers = #tpu.dot_dimension_numbers<[1], [0], [0], [1], [0, 0, 1, 1], [], []>, precision = #tpu.contract_precision<fp32>} : vector<8x60xf32>, vector<60x8xf32>, vector<8x8xf32> -> vector<8x8xf32>
    %c0_3 = arith.constant 0 : index
    %c0_4 = arith.constant 0 : index
    %3 = vector.load %arg3[%c0_3, %c0_4] : memref<1x8xf32, #tpu.memory_space<vmem>>, vector<1x8xf32>
    %4 = vector.broadcast %3 : vector<1x8xf32> to vector<8x8xf32>
    %5 = arith.addf %2, %4 : vector<8x8xf32>
    %cst_5 = arith.constant dense<0xFF800000> : vector<8xf32>
    %6 = vector.multi_reduction <maximumf>, %5, %cst_5 [1] : vector<8x8xf32> to vector<8xf32>
    %7 = vector.shape_cast %6 : vector<8xf32> to vector<8x1xf32>
    %8 = vector.broadcast %7 : vector<8x1xf32> to vector<8x8xf32>
    %9 = arith.subf %5, %8 : vector<8x8xf32>
    %10 = math.exp %9 : vector<8x8xf32>
    %cst_6 = arith.constant dense<0.000000e+00> : vector<8xf32>
    %11 = vector.multi_reduction <add>, %10, %cst_6 [1] : vector<8x8xf32> to vector<8xf32>
    %12 = vector.shape_cast %11 : vector<8xf32> to vector<8x1xf32>
    %13 = tpu.reciprocal %12 : vector<8x1xf32> -> vector<8x1xf32>
    %14 = vector.broadcast %13 : vector<8x1xf32> to vector<8x8xf32>
    %15 = arith.mulf %10, %14 : vector<8x8xf32>
    %16 = vector.extract_strided_slice %15 {offsets = [0, 0], sizes = [8, 4], strides = [1, 1]} : vector<8x8xf32> to vector<8x4xf32>
    %c0_7 = arith.constant 0 : index
    %c0_8 = arith.constant 0 : index
    %17 = vector.load %arg4[%c0_7, %c0_8] : memref<8x4xf32, #tpu.memory_space<vmem>>, vector<8x4xf32>
    tpu.vector_store %arg4[%c0_7, %c0_8], %16 {strides = array<i32>} : memref<8x4xf32, #tpu.memory_space<vmem>>, vector<8x4xf32>,
    return
  }
  func.func @transform_0(%arg0: i32) -> (i32, i32) {
    %c0_i32 = arith.constant 0 : i32
    %c0_i32_0 = arith.constant 0 : i32
    return %arg0, %c0_i32 : i32, i32
  }
  func.func @transform_1(%arg0: i32) -> (i32, i32) {
    %c0_i32 = arith.constant 0 : i32
    %c0_i32_0 = arith.constant 0 : i32
    %c0_i32_1 = arith.constant 0 : i32
    return %c0_i32, %c0_i32_0 : i32, i32
  }
  func.func @transform_2(%arg0: i32) -> (i32, i32) {
    %c0_i32 = arith.constant 0 : i32
    %c0_i32_0 = arith.constant 0 : i32
    %c0_i32_1 = arith.constant 0 : i32
    return %c0_i32, %c0_i32_0 : i32, i32
  }
  func.func @transform_3(%arg0: i32) -> (i32, i32) {
    %c0_i32 = arith.constant 0 : i32
    %c0_i32_0 = arith.constant 0 : i32
    return %arg0, %c0_i32 : i32, i32
  }
}

</mosaic_0001>

<llo_original>
// kernel: tpu_custom_call.1
$region0: #{tpu_custom_call.1}
  #allocation0 [shape = 'u32[]', space=smem, size = 0x4, offset = 0x4, fixed_abs, tag = 'smem constant byte address 0x4 - core index']
  #allocation1 [shape = 'u32[72,128]{1,0:T(1,128)}', space=vmem, size = 0x9000, scoped, tag = 'internal scratch']
  %s0 = inlined_call_operand.vmem [shape: f32[8,60], index: 0, kind: input, shape index: {}]
  %s1 = inlined_call_operand.vmem [shape: f32[60,8], index: 1, kind: input, shape index: {}]
  %s2 = inlined_call_operand.vmem [shape: f32[1,8], index: 2, kind: input, shape index: {}]
  %s3 = inlined_call_operand.vmem [shape: f32[8,4], index: 3, kind: output, shape index: {}]
  %s4 = sld [smem:[#allocation0]]
  $region22: #{tpu_custom_call.1} parent=0
    _
  %s6 = ssub.s32 1, %s4
  %s7 = scalar_select 0, %s6, %s4
  // Predicated region
  $region2: #{tpu_custom_call.1} parent=0 // pred_check
    _
  $region3: #{tpu_custom_call.1} parent=0 // pred_check_branch
    %9 = sbr.rel (0) target = $region5
  $region4: #{tpu_custom_call.1} parent=0 // pred_region
    _
  $region5: #{tpu_custom_call.1} parent=0 // pred_fallthru
    _
  // Predicated region
  $region6: #{tpu_custom_call.1} parent=0 // pred_check
    _
  $region7: #{tpu_custom_call.1} parent=0 // pred_check_branch
    %11 = sbr.rel (0) target = $region9
  $region8: #{tpu_custom_call.1} parent=0 // pred_region
    _
  $region9: #{tpu_custom_call.1} parent=0 // pred_fallthru
    _
  // Predicated region
  $region10: #{tpu_custom_call.1} parent=0 // pred_check
    _
  $region11: #{tpu_custom_call.1} parent=0 // pred_check_branch
    %13 = sbr.rel (0) target = $region13
  $region12: #{tpu_custom_call.1} parent=0 // pred_region
    _
  $region13: #{tpu_custom_call.1} parent=0 // pred_fallthru
    _
  %v14 = vld [vmem:[%s0] sm:$0xff]
  %v15 = vld [vmem:[%s1] sm:$0xff]
  %v16 = vld [vmem:[%s1 + $0x8] sm:$0xff]
  %v17 = vld [vmem:[%s1 + $0x10] sm:$0xff]
  %v18 = vld [vmem:[%s1 + $0x18] sm:$0xff]
  %v19 = vld [vmem:[%s1 + $0x20] sm:$0xff]
  %v20 = vld [vmem:[%s1 + $0x28] sm:$0xff]
  %v21 = vld [vmem:[%s1 + $0x30] sm:$0xff]
  %v22 = vld [vmem:[%s1 + $0x38] sm:$0xf]
  %v23 = vld [vmem:[%s2] sm:$0x1]
  %v25 = vperm.slane %v23, 0
  %vm27 = vcmask 490496
  %v29 = vsel %vm27, %v14, 0
  %vm31 = vcmask 1043456
  %v33 = vsel %vm31, %v22, 0
  %35 = vmatpush.msra.mxu0 0.0
  %36 = vmatpush.msra.mxu0 0.0
  %37 = vmatpush.msra.mxu0 0.0
  %38 = vmatpush.msra.mxu0 0.0
  %39 = vmatpush.msra.mxu0 0.0
  %40 = vmatpush.msra.mxu0 0.0
  %41 = vmatpush.msra.mxu0 0.0
  %42 = vmatpush.msra.mxu0 0.0
  %v43 = vand.u32 %v33, 4294901760
  %44 = vmatpush.msra.mxu0 %v43
  %v45 = vand.u32 %v21, 4294901760
  %46 = vmatpush.msra.mxu0 %v45
  %v47 = vand.u32 %v20, 4294901760
  %48 = vmatpush.msra.mxu0 %v47
  %v49 = vand.u32 %v19, 4294901760
  %50 = vmatpush.msra.mxu0 %v49
  %v51 = vand.u32 %v18, 4294901760
  %52 = vmatpush.msra.mxu0 %v51
  %v53 = vand.u32 %v17, 4294901760
  %54 = vmatpush.msra.mxu0 %v53
  %v55 = vand.u32 %v16, 4294901760
  %56 = vmatpush.msra.mxu0 %v55
  %v57 = vand.u32 %v15, 4294901760
  %58 = vmatpush.msra.mxu0 %v57
  %v59 = vand.u32 %v29, 4294901760
  %v60 = vsub.f32 %v29, %v59
  %v61 = vand.u32 %v60, 4294901760
  %v62 = vsub.f32 %v60, %v61
  %v63 = vand.u32 %v62, 4294901760
  %64 = vmatmul.f32.gmra.mxu0 %v63
  %v65 = vpop.f32.mrf.mxu0
  %v66 = vadd.f32 %v25, %v65
  %67 = vdwg.mxu0
  %68 = vmatpush.msra.mxu0 0.0
  %69 = vmatpush.msra.mxu0 0.0
  %70 = vmatpush.msra.mxu0 0.0
  %71 = vmatpush.msra.mxu0 0.0
  %72 = vmatpush.msra.mxu0 0.0
  %73 = vmatpush.msra.mxu0 0.0
  %74 = vmatpush.msra.mxu0 0.0
  %75 = vmatpush.msra.mxu0 0.0
  %v76 = vand.u32 %v33, 4294901760
  %v77 = vsub.f32 %v33, %v76
  %v78 = vand.u32 %v77, 4294901760
  %v79 = vsub.f32 %v77, %v78
  %v80 = vand.u32 %v79, 4294901760
  %81 = vmatpush.msra.mxu0 %v80
  %v82 = vand.u32 %v21, 4294901760
  %v83 = vsub.f32 %v21, %v82
  %v84 = vand.u32 %v83, 4294901760
  %v85 = vsub.f32 %v83, %v84
  %v86 = vand.u32 %v85, 4294901760
  %87 = vmatpush.msra.mxu0 %v86
  %v88 = vand.u32 %v20, 4294901760
  %v89 = vsub.f32 %v20, %v88
  %v90 = vand.u32 %v89, 4294901760
  %v91 = vsub.f32 %v89, %v90
  %v92 = vand.u32 %v91, 4294901760
  %93 = vmatpush.msra.mxu0 %v92
  %v94 = vand.u32 %v19, 4294901760
  %v95 = vsub.f32 %v19, %v94
  %v96 = vand.u32 %v95, 4294901760
  %v97 = vsub.f32 %v95, %v96
  %v98 = vand.u32 %v97, 4294901760
  %99 = vmatpush.msra.mxu0 %v98
  %v100 = vand.u32 %v18, 4294901760
  %v101 = vsub.f32 %v18, %v100
  %v102 = vand.u32 %v101, 4294901760
  %v103 = vsub.f32 %v101, %v102
  %v104 = vand.u32 %v103, 4294901760
  %105 = vmatpush.msra.mxu0 %v104
  %v106 = vand.u32 %v17, 4294901760
  %v107 = vsub.f32 %v17, %v106
  %v108 = vand.u32 %v107, 4294901760
  %v109 = vsub.f32 %v107, %v108
  %v110 = vand.u32 %v109, 4294901760
  %111 = vmatpush.msra.mxu0 %v110
  %v112 = vand.u32 %v16, 4294901760
  %v113 = vsub.f32 %v16, %v112
  %v114 = vand.u32 %v113, 4294901760
  %v115 = vsub.f32 %v113, %v114
  %v116 = vand.u32 %v115, 4294901760
  %117 = vmatpush.msra.mxu0 %v116
  %v118 = vand.u32 %v15, 4294901760
  %v119 = vsub.f32 %v15, %v118
  %v120 = vand.u32 %v119, 4294901760
  %v121 = vsub.f32 %v119, %v120
  %v122 = vand.u32 %v121, 4294901760
  %123 = vmatpush.msra.mxu0 %v122
  %v124 = vand.u32 %v29, 4294901760
  %125 = vmatmul.f32.gmra.mxu0 %v124
  %v126 = vpop.f32.mrf.mxu0
  %v127 = vadd.f32 %v66, %v126
  %128 = vdwg.mxu0
  %129 = vmatpush.msra.mxu0 0.0
  %130 = vmatpush.msra.mxu0 0.0
  %131 = vmatpush.msra.mxu0 0.0
  %132 = vmatpush.msra.mxu0 0.0
  %133 = vmatpush.msra.mxu0 0.0
  %134 = vmatpush.msra.mxu0 0.0
  %135 = vmatpush.msra.mxu0 0.0
  %136 = vmatpush.msra.mxu0 0.0
  %v137 = vand.u32 %v33, 4294901760
  %v138 = vsub.f32 %v33, %v137
  %139 = vmatpush.msra.mxu0 %v138
  %v140 = vand.u32 %v21, 4294901760
  %v141 = vsub.f32 %v21, %v140
  %142 = vmatpush.msra.mxu0 %v141
  %v143 = vand.u32 %v20, 4294901760
  %v144 = vsub.f32 %v20, %v143
  %145 = vmatpush.msra.mxu0 %v144
  %v146 = vand.u32 %v19, 4294901760
  %v147 = vsub.f32 %v19, %v146
  %148 = vmatpush.msra.mxu0 %v147
  %v149 = vand.u32 %v18, 4294901760
  %v150 = vsub.f32 %v18, %v149
  %151 = vmatpush.msra.mxu0 %v150
  %v152 = vand.u32 %v17, 4294901760
  %v153 = vsub.f32 %v17, %v152
  %154 = vmatpush.msra.mxu0 %v153
  %v155 = vand.u32 %v16, 4294901760
  %v156 = vsub.f32 %v16, %v155
  %157 = vmatpush.msra.mxu0 %v156
  %v158 = vand.u32 %v15, 4294901760
  %v159 = vsub.f32 %v15, %v158
  %160 = vmatpush.msra.mxu0 %v159
  %v161 = vand.u32 %v29, 4294901760
  %v162 = vsub.f32 %v29, %v161
  %163 = vmatmul.f32.gmra.mxu0 %v162
  %v164 = vpop.f32.mrf.mxu0
  %v165 = vadd.f32 %v127, %v164
  %166 = vdwg.mxu0
  %167 = vmatpush.msra.mxu0 0.0
  %168 = vmatpush.msra.mxu0 0.0
  %169 = vmatpush.msra.mxu0 0.0
  %170 = vmatpush.msra.mxu0 0.0
  %171 = vmatpush.msra.mxu0 0.0
  %172 = vmatpush.msra.mxu0 0.0
  %173 = vmatpush.msra.mxu0 0.0
  %174 = vmatpush.msra.mxu0 0.0
  %v175 = vand.u32 %v33, 4294901760
  %176 = vmatpush.msra.mxu0 %v175
  %v177 = vand.u32 %v21, 4294901760
  %178 = vmatpush.msra.mxu0 %v177
  %v179 = vand.u32 %v20, 4294901760
  %180 = vmatpush.msra.mxu0 %v179
  %v181 = vand.u32 %v19, 4294901760
  %182 = vmatpush.msra.mxu0 %v181
  %v183 = vand.u32 %v18, 4294901760
  %184 = vmatpush.msra.mxu0 %v183
  %v185 = vand.u32 %v17, 4294901760
  %186 = vmatpush.msra.mxu0 %v185
  %v187 = vand.u32 %v16, 4294901760
  %188 = vmatpush.msra.mxu0 %v187
  %v189 = vand.u32 %v15, 4294901760
  %190 = vmatpush.msra.mxu0 %v189
  %v191 = vand.u32 %v29, 4294901760
  %v192 = vsub.f32 %v29, %v191
  %v193 = vand.u32 %v192, 4294901760
  %194 = vmatmul.f32.gmra.mxu0 %v193
  %v195 = vpop.f32.mrf.mxu0
  %v196 = vadd.f32 %v165, %v195
  %197 = vdwg.mxu0
  %198 = vmatpush.msra.mxu0 0.0
  %199 = vmatpush.msra.mxu0 0.0
  %200 = vmatpush.msra.mxu0 0.0
  %201 = vmatpush.msra.mxu0 0.0
  %202 = vmatpush.msra.mxu0 0.0
  %203 = vmatpush.msra.mxu0 0.0
  %204 = vmatpush.msra.mxu0 0.0
  %205 = vmatpush.msra.mxu0 0.0
  %v206 = vand.u32 %v33, 4294901760
  %v207 = vsub.f32 %v33, %v206
  %v208 = vand.u32 %v207, 4294901760
  %209 = vmatpush.msra.mxu0 %v208
  %v210 = vand.u32 %v21, 4294901760
  %v211 = vsub.f32 %v21, %v210
  %v212 = vand.u32 %v211, 4294901760
  %213 = vmatpush.msra.mxu0 %v212
  %v214 = vand.u32 %v20, 4294901760
  %v215 = vsub.f32 %v20, %v214
  %v216 = vand.u32 %v215, 4294901760
  %217 = vmatpush.msra.mxu0 %v216
  %v218 = vand.u32 %v19, 4294901760
  %v219 = vsub.f32 %v19, %v218
  %v220 = vand.u32 %v219, 4294901760
  %221 = vmatpush.msra.mxu0 %v220
  %v222 = vand.u32 %v18, 4294901760
  %v223 = vsub.f32 %v18, %v222
  %v224 = vand.u32 %v223, 4294901760
  %225 = vmatpush.msra.mxu0 %v224
  %v226 = vand.u32 %v17, 4294901760
  %v227 = vsub.f32 %v17, %v226
  %v228 = vand.u32 %v227, 4294901760
  %229 = vmatpush.msra.mxu0 %v228
  %v230 = vand.u32 %v16, 4294901760
  %v231 = vsub.f32 %v16, %v230
  %v232 = vand.u32 %v231, 4294901760
  %233 = vmatpush.msra.mxu0 %v232
  %v234 = vand.u32 %v15, 4294901760
  %v235 = vsub.f32 %v15, %v234
  %v236 = vand.u32 %v235, 4294901760
  %237 = vmatpush.msra.mxu0 %v236
  %v238 = vand.u32 %v29, 4294901760
  %239 = vmatmul.f32.gmra.mxu0 %v238
  %v240 = vpop.f32.mrf.mxu0
  %v241 = vadd.f32 %v196, %v240
  %242 = vdwg.mxu0
  %243 = vmatpush.msra.mxu0 0.0
  %244 = vmatpush.msra.mxu0 0.0
  %245 = vmatpush.msra.mxu0 0.0
  %246 = vmatpush.msra.mxu0 0.0
  %247 = vmatpush.msra.mxu0 0.0
  %248 = vmatpush.msra.mxu0 0.0
  %249 = vmatpush.msra.mxu0 0.0
  %250 = vmatpush.msra.mxu0 0.0
  %v251 = vand.u32 %v33, 4294901760
  %252 = vmatpush.msra.mxu0 %v251
  %v253 = vand.u32 %v21, 4294901760
  %254 = vmatpush.msra.mxu0 %v253
  %v255 = vand.u32 %v20, 4294901760
  %256 = vmatpush.msra.mxu0 %v255
  %v257 = vand.u32 %v19, 4294901760
  %258 = vmatpush.msra.mxu0 %v257
  %v259 = vand.u32 %v18, 4294901760
  %260 = vmatpush.msra.mxu0 %v259
  %v261 = vand.u32 %v17, 4294901760
  %262 = vmatpush.msra.mxu0 %v261
  %v263 = vand.u32 %v16, 4294901760
  %264 = vmatpush.msra.mxu0 %v263
  %v265 = vand.u32 %v15, 4294901760
  %266 = vmatpush.msra.mxu0 %v265
  %v267 = vand.u32 %v29, 4294901760
  %268 = vmatmul.f32.gmra.mxu0 %v267
  %v269 = vpop.f32.mrf.mxu0
  %v270 = vadd.f32 %v241, %v269
  %271 = vdwg.mxu0
  %vm272 = vcmask 64512
  %v273 = vsel %vm272, %v270, -inf
  %274 = vmax.xlane.f32.xlu0 %v273
  %v275 = vpop.xlane.xlu0 %274
  %v276 = vsub.f32 %v270, %v275
  %v277 = vmul.f32 %v276, 1.442695
  %v278 = vpow.pop %v277
  %v279 = vsel %vm272, %v278, 0.0
  %280 = vadd.xlane.f32.xlu0 %v279
  %v281 = vpop.xlane.xlu0 %280
  %v282 = vrcp.pop %v281
  %v283 = vmul.f32 %v281, %v282
  %v284 = vsub.f32 1.0, %v283
  %v285 = vmul.f32 %v282, %v284
  %v286 = vadd.f32 %v282, %v285
  %vm287 = vweird.f32 %v281
  %vm288 = vweird.f32 %v282
  %vm289 = vmor %vm287, %vm288
  %v290 = vsel %vm289, %v282, %v286
  %v291 = vand.u32 2147483647, %v281
  %vm292 = vcmp.eq.f32.partialorder %v291, 8.507059e+37
  %v293 = vand.u32 %v281, 2147483648
  %v294 = vor.u32 1.1754944e-38, %v293
  %v295 = vsel %vm292, %v294, %v290
  %v296 = vmul.f32 %v278, %v295
  %vm297 = vcmask 31744
  %298 = vst.msk [vmem:[%s3] sm:$0xff] %vm297, %v296
  // Predicated region
  $region14: #{tpu_custom_call.1} parent=0 // pred_check
    _
  $region15: #{tpu_custom_call.1} parent=0 // pred_check_branch
    %300 = sbr.rel (0) target = $region17
  $region16: #{tpu_custom_call.1} parent=0 // pred_region
    _
  $region17: #{tpu_custom_call.1} parent=0 // pred_fallthru
    _
  // Predicated region
  $region18: #{tpu_custom_call.1} parent=0 // pred_check
    _
  $region19: #{tpu_custom_call.1} parent=0 // pred_check_branch
    %302 = sbr.rel (0) target = $region21
  $region20: #{tpu_custom_call.1} parent=0 // pred_region
    _
  $region21: #{tpu_custom_call.1} parent=0 // pred_fallthru
    _

</llo_original>
